<compile_context>
chip_gen: v7x
topology: tpu7x:2x2x1
jax: 0.10.0
libtpu: 0.0.40
codegen_flags: <defaults>
</compile_context>

<pallas_src>
import jax
import jax.numpy as jnp
from jax import lax
from jax.experimental import pallas as pl
from jax.experimental.pallas import tpu as pltpu

BATCH_SIZE = 20   # hardcoded in the PyTorch module
N_ROWS = 12       # labels[j][c], j in range(12)


def _my_loss_kernel(out_ref, lab_ref, loss_ref):
    # out_ref: (BATCH_SIZE-1, N_ROWS) f32 VMEM tile (full array, no grid)
    # lab_ref: (N_ROWS, BATCH_SIZE)   f32 VMEM tile (raw labels, no transpose)
    # loss_ref: (1, 1) SMEM scalar output
    s_out = jnp.sum(out_ref[...])

    lab = lab_ref[...]
    # Keep only columns c in [0, BATCH_SIZE-1): lane mask, no slice/copy.
    col = lax.broadcasted_iota(jnp.int32, lab.shape, dimension=1)
    s_lab = jnp.sum(jnp.where(col < BATCH_SIZE - 1, lab, 0.0))

    loss_ref[0, 0] = s_out - s_lab


def my_loss(outputs, labels):
    """outputs: (BATCH_SIZE-1, 12) f32; labels: (12, BATCH_SIZE) f32 -> scalar f32."""
    n_elem = (BATCH_SIZE - 1) * N_ROWS
    cost = pl.CostEstimate(
        flops=2 * n_elem,                                   # ~456
        transcendentals=0,
        bytes_accessed=outputs.size * 4 + labels.size * 4 + 4,
    )
    loss = pl.pallas_call(
        _my_loss_kernel,
        out_shape=jax.ShapeDtypeStruct((1, 1), jnp.float32),
        in_specs=[
            pl.BlockSpec(memory_space=pltpu.MemorySpace.VMEM),
            pl.BlockSpec(memory_space=pltpu.MemorySpace.VMEM),
        ],
        out_specs=pl.BlockSpec(memory_space=pltpu.MemorySpace.SMEM),
        cost_estimate=cost,
    )(outputs, labels)
    return loss[0, 0]


if __name__ == "__main__":
    key = jax.random.PRNGKey(0)
    k_out, k_lab = jax.random.split(key)

    # Shapes implied by the module: outputs (batch_size-1, 12), labels (12, batch_size)
    outputs = jax.random.normal(k_out, (BATCH_SIZE - 1, N_ROWS), dtype=jnp.float32)
    labels = jax.random.normal(k_lab, (N_ROWS, BATCH_SIZE), dtype=jnp.float32)

    loss = jax.block_until_ready(my_loss(outputs, labels))

    # Pure-JAX reference check of the PyTorch semantics.
    ref = jnp.sum(outputs - labels[:N_ROWS, : BATCH_SIZE - 1].T)
    assert jnp.allclose(loss, ref, atol=1e-5, rtol=1e-5), (loss, ref)

    print("KERNEL_OK")
</pallas_src>

<mosaic_0001>
module attributes {stable_mosaic.version = 11 : i64} {
  func.func @_my_loss_kernel(%arg0: memref<19x12xf32, #tpu.memory_space<vmem>>, %arg1: memref<12x20xf32, #tpu.memory_space<vmem>>, %arg2: memref<1x1xf32, #tpu.memory_space<smem>>) attributes {dimension_semantics = [], scalar_prefetch = 0 : i64, scratch_operands = 0 : i64, tpu.core_type = #tpu.core_type<tc>} {
    %c0 = arith.constant 0 : index
    %c0_0 = arith.constant 0 : index
    %0 = vector.load %arg0[%c0, %c0_0] : memref<19x12xf32, #tpu.memory_space<vmem>>, vector<19x12xf32>
    %1 = vector.shape_cast %0 : vector<19x12xf32> to vector<1x19x12xf32>
    %cst = arith.constant dense<0.000000e+00> : vector<1xf32>
    %2 = vector.multi_reduction <add>, %1, %cst [1, 2] : vector<1x19x12xf32> to vector<1xf32>
    %3 = vector.shape_cast %2 : vector<1xf32> to vector<1x1x1xf32>
    %4 = vector.extract %3[0, 0, 0] : f32 from vector<1x1x1xf32>
    %c0_1 = arith.constant 0 : index
    %c0_2 = arith.constant 0 : index
    %5 = vector.load %arg1[%c0_1, %c0_2] : memref<12x20xf32, #tpu.memory_space<vmem>>, vector<12x20xf32>
    %6 = tpu.iota {dimensions = array<i32: 1>} : vector<12x20xi32>
    %c19_i32 = arith.constant 19 : i32
    %7 = vector.broadcast %c19_i32 : i32 to vector<12x20xi32>
    %8 = arith.cmpi slt, %6, %7 : vector<12x20xi32>
    %cst_3 = arith.constant 0.000000e+00 : f32
    %9 = vector.broadcast %cst_3 : f32 to vector<12x20xf32>
    %10 = arith.select %8, %5, %9 : vector<12x20xi1>, vector<12x20xf32>
    %11 = vector.shape_cast %10 : vector<12x20xf32> to vector<1x12x20xf32>
    %cst_4 = arith.constant dense<0.000000e+00> : vector<1xf32>
    %12 = vector.multi_reduction <add>, %11, %cst_4 [1, 2] : vector<1x12x20xf32> to vector<1xf32>
    %13 = vector.shape_cast %12 : vector<1xf32> to vector<1x1x1xf32>
    %14 = vector.extract %13[0, 0, 0] : f32 from vector<1x1x1xf32>
    %15 = arith.subf %4, %14 : f32
    %c0_5 = arith.constant 0 : index
    %c0_6 = arith.constant 0 : index
    %16 = memref.load %arg2[%c0_5, %c0_6] : memref<1x1xf32, #tpu.memory_space<smem>>
    memref.store %15, %arg2[%c0_5, %c0_6] : memref<1x1xf32, #tpu.memory_space<smem>>
    return
  }
}

</mosaic_0001>

<llo_original>
// kernel: tpu_custom_call.1
$region0: #{tpu_custom_call.1}
  #allocation0 [shape = 'u32[]', space=smem, size = 0x4, offset = 0x4, fixed_abs, tag = 'smem constant byte address 0x4 - core index']
  #allocation1 [shape = 'u32[144,128]{1,0:T(1,128)}', space=vmem, size = 0x12000, scoped, tag = 'internal scratch']
  %s0 = inlined_call_operand.vmem [shape: f32[19,12], index: 0, kind: input, shape index: {}]
  %s1 = inlined_call_operand.vmem [shape: f32[12,20], index: 1, kind: input, shape index: {}]
  %s2 = inlined_call_operand.hbm [shape: f32[1,1], index: 2, kind: output, shape index: {}]
  %s3 = sld [smem:[#allocation0]]
  $region18: #{tpu_custom_call.1} parent=0
    _
  %s5 = ssub.s32 1, %s3
  %s6 = scalar_select 0, %s5, %s3
  $region1: #{tpu_custom_call.1} parent=0
    #allocation2 [shape = 'u8[512]{0}', space=smem, size = 0x200, scoped, tag = 'output window, operand 0, single buffered']
    #allocation3 [shape = 's32[1]{0}', space=sflag, size = 0x4, scoped, tag = 'scoped memory for tpu_custom_call.1']
    %7 = vsyncpa [#allocation3], 0
    // Predicated region
    $region2: #{tpu_custom_call.1} parent=1 // pred_check
      _
    $region3: #{tpu_custom_call.1} parent=1 // pred_check_branch
      %9 = sbr.rel (0) target = $region5
    $region4: #{tpu_custom_call.1} parent=1 // pred_region
      _
    $region5: #{tpu_custom_call.1} parent=1 // pred_fallthru
      _
    // Predicated region
    $region6: #{tpu_custom_call.1} parent=1 // pred_check
      _
    $region7: #{tpu_custom_call.1} parent=1 // pred_check_branch
      %11 = sbr.rel (0) target = $region9
    $region8: #{tpu_custom_call.1} parent=1 // pred_region
      _
    $region9: #{tpu_custom_call.1} parent=1 // pred_fallthru
      _
    %v12 = vld [vmem:[%s0] sm:$0xff]
    %v13 = vld [vmem:[%s0 + $0x8] sm:$0xff]
    %v14 = vld [vmem:[%s0 + $0x10] sm:$0x7]
    %vm15 = vcmask 97280
    %v16 = vsel %vm15, %v12, 0.0
    %v17 = vsel %vm15, %v13, 0.0
    %v18 = vadd.f32 %v16, %v17
    %vm19 = vcmask 92160
    %v20 = vsel %vm19, %v14, 0.0
    %v21 = vadd.f32 %v18, %v20
    %22 = vadd.xlane.f32.xlu0 %v21
    %v23 = vpop.xlane.xlu0 %22
    %v24 = vrot.slane %v23, 4
    %v25 = vadd.f32 %v23, %v24
    %v26 = vrot.slane %v25, 2
    %v27 = vadd.f32 %v25, %v26
    %v28 = vrot.slane %v27, 1
    %v29 = vadd.f32 %v27, %v28
    %s30 = vtos %v29
    %v31 = vld [vmem:[%s1] sm:$0xff]
    %v32 = vld [vmem:[%s1 + $0x8] sm:$0xf]
    %v33 = vlaneseq
    %v34 = vand.u32 %v33, 127
    %vm35 = vcmp.lt.s32.totalorder %v34, 19
    %v36 = vsel %vm35, %v31, 0.0
    %v37 = vsel %vm35, %v32, 0.0
    %vm38 = vcmask 162816
    %v39 = vsel %vm38, %v36, 0.0
    %vm40 = vcmask 158720
    %v41 = vsel %vm40, %v37, 0.0
    %v42 = vadd.f32 %v39, %v41
    %43 = vadd.xlane.f32.xlu0 %v42
    %v44 = vpop.xlane.xlu0 %43
    %v45 = vrot.slane %v44, 4
    %v46 = vadd.f32 %v44, %v45
    %v47 = vrot.slane %v46, 2
    %v48 = vadd.f32 %v46, %v47
    %v49 = vrot.slane %v48, 1
    %v50 = vadd.f32 %v48, %v49
    %s51 = vtos %v50
    %s52 = ssub.f32 %s30, %s51
    %s53 = scalar_lea.smem [#allocation2], 0
    %54 = sst [smem:[%s53]] %s52
    // Predicated region
    $region10: #{tpu_custom_call.1} parent=1 // pred_check
      _
    $region11: #{tpu_custom_call.1} parent=1 // pred_check_branch
      %56 = sbr.rel (0) target = $region13
    $region12: #{tpu_custom_call.1} parent=1 // pred_region
      %s58 = ssub.s32 16, 16
      %59 = vsyncadd [#allocation3], %s58
      %62 = dma.smem_to_hbm [#allocation2], 16, %s2, [#allocation3]
    $region13: #{tpu_custom_call.1} parent=1 // pred_fallthru
      _
    // Predicated region
    $region14: #{tpu_custom_call.1} parent=1 // pred_check
      _
    $region15: #{tpu_custom_call.1} parent=1 // pred_check_branch
      %64 = sbr.rel (0) target = $region17
    $region16: #{tpu_custom_call.1} parent=1 // pred_region
      %65 = dma.done [#allocation3], 16
    $region17: #{tpu_custom_call.1} parent=1 // pred_fallthru
      _
    %66 = sfence
    %67 = vsyncpa [#allocation3], 1

</llo_original>
